<compile_context>
chip_gen: v7x
topology: tpu7x:2x2x1
jax: 0.10.0
libtpu: 0.0.40
codegen_flags: <defaults>
</compile_context>

<pallas_src>
import functools

import jax
import jax.numpy as jnp
from jax.experimental import pallas as pl
from jax.experimental.pallas import tpu as pltpu


# ----------------------------------------------------------------------------
# helpers
# ----------------------------------------------------------------------------
def _round_up(x: int, m: int) -> int:
    return ((x + m - 1) // m) * m


def _pick_tile(extent: int, align: int, cap: int) -> int:
    """Tile size (multiple of `align`) minimizing padding waste; on ties prefer
    fewer grid steps (larger tiles).  Full (rounded) extent if it fits the cap."""
    ea = _round_up(extent, align)
    if ea <= cap:
        return ea  # single full-extent block along this axis
    best_key, best_t = None, align
    for t in range(align, cap + 1, align):
        padded = _round_up(ea, t)
        key = (padded - ea, padded // t)
        if best_key is None or key < best_key:
            best_key, best_t = key, t
    return best_t


def _maybe_split_tn(tn: int, out_p: int, n_i_blocks: int) -> int:
    """If the (i, j) parallel grid would be 1x1, split the output tile so both
    v7x TensorCores get blocks (cheap on single-core chips)."""
    if n_i_blocks >= 2 or out_p // tn >= 2:
        return tn
    best = tn
    for cand in range(128, out_p // 2 + 1, 128):
        if out_p % cand == 0:
            best = cand  # largest 128-multiple divisor giving >= 2 blocks
    return best


def _vmem_limit_bytes() -> int:
    """Generation-aware scoped-VMEM limit (v5e/v6e 128 MiB phys, v7x 64 MiB)."""
    try:
        cap = int(pltpu.get_tpu_info().vmem_capacity_bytes)
    except Exception:
        cap = 64 * 1024 * 1024  # conservative: v7x per-TensorCore VMEM
    return int(min(cap * 3 // 4, 100 * 1024 * 1024))


# ----------------------------------------------------------------------------
# kernels
# ----------------------------------------------------------------------------
def _linear_tiled_kernel(x_ref, w_ref, b_ref, o_ref):
    # x_ref: (tm, tk) bf16, w_ref: (tk, tn) bf16, b_ref: (1, tn) f32,
    # o_ref: (tm, tn) f32, resident across the k (reduction) axis.
    k = pl.program_id(2)
    part = jnp.dot(x_ref[...], w_ref[...], preferred_element_type=jnp.float32)

    @pl.when(k == 0)
    def _first():
        o_ref[...] = part + b_ref[...]

    @pl.when(k > 0)
    def _rest():
        o_ref[...] += part


def _linear_small_kernel(x_ref, w_ref, b_ref, o_ref):
    # Whole-problem single block, exact f32 path for tiny layers.
    o_ref[...] = (
        jnp.dot(x_ref[...], w_ref[...], preferred_element_type=jnp.float32)
        + b_ref[...]
    )


# ----------------------------------------------------------------------------
# pallas_call wrappers
# ----------------------------------------------------------------------------
@functools.partial(jax.jit, static_argnames=("tm", "tn", "tk", "vmem_limit"))
def _linear_tiled(x2, w, b2, *, tm, tn, tk, vmem_limit):
    """x2: (Bp, INp) bf16, w: (INp, OUTp) bf16, b2: (1, OUTp) f32 -> (Bp, OUTp) f32."""
    Bp, INp = x2.shape
    OUTp = w.shape[1]
    grid = (Bp // tm, OUTp // tn, INp // tk)  # reduction (IN) axis last

    ib = x2.dtype.itemsize
    cost = pl.CostEstimate(
        flops=2 * Bp * INp * OUTp,
        bytes_accessed=(
            Bp * INp * ib * (OUTp // tn)      # x re-streamed per j block
            + INp * OUTp * ib * (Bp // tm)    # W re-streamed per i block
            + Bp * OUTp * 4                   # output
            + OUTp * 4                        # bias
        ),
        transcendentals=0,
    )

    return pl.pallas_call(
        _linear_tiled_kernel,
        out_shape=jax.ShapeDtypeStruct((Bp, OUTp), jnp.float32),
        grid_spec=pltpu.PrefetchScalarGridSpec(
            num_scalar_prefetch=0,
            grid=grid,
            in_specs=[
                pl.BlockSpec((tm, tk), lambda i, j, k: (i, k)),   # x tile
                pl.BlockSpec((tk, tn), lambda i, j, k: (k, j)),   # W tile
                pl.BlockSpec((1, tn), lambda i, j, k: (0, j)),    # bias row
            ],
            out_specs=pl.BlockSpec((tm, tn), lambda i, j, k: (i, j)),
        ),
        compiler_params=pltpu.CompilerParams(
            dimension_semantics=("parallel", "parallel", "arbitrary"),
            vmem_limit_bytes=vmem_limit,
        ),
        cost_estimate=cost,
    )(x2, w, b2)


@jax.jit
def _linear_small(x2, w, b2):
    """Single-block exact-f32 path: x2 (B, IN), w (IN, OUT), b2 (1, OUT)."""
    B = x2.shape[0]
    OUT = w.shape[1]
    return pl.pallas_call(
        _linear_small_kernel,
        out_shape=jax.ShapeDtypeStruct((B, OUT), jnp.float32),
    )(x2, w, b2)


# ----------------------------------------------------------------------------
# module
# ----------------------------------------------------------------------------
class PallasLinear:
    """Forward-pass equivalent of the PyTorch `Linear` module.

    Pre-pads and pre-casts the weight/bias once at construction so the per-call
    path only pads/casts the activations.
    """

    _SMALL_BYTES = 2 * 1024 * 1024  # single-block fast-path threshold

    def __init__(self, weights, bias, compute_dtype=jnp.bfloat16):
        IN, OUT = weights.shape
        self.IN, self.OUT = IN, OUT
        self.compute_dtype = compute_dtype
        self._sublane = max(8, 32 // jnp.dtype(compute_dtype).itemsize)
        self._vmem_limit = _vmem_limit_bytes()

        # raw f32 copies (exact small path)
        self._w_f32 = jnp.asarray(weights, jnp.float32)
        self._b_row = jnp.asarray(bias, jnp.float32).reshape(1, OUT)

        # tiled-path tiles along IN / OUT are batch-independent
        self._tn = _pick_tile(OUT, 128, 1024)
        self._tk = _pick_tile(IN, 128, 1024)
        self._OUTp = _round_up(OUT, self._tn)
        self._INp = _round_up(IN, self._tk)

        # hoisted: pad + cast weights / bias ONCE
        w = self._w_f32
        if (self._INp, self._OUTp) != (IN, OUT):
            w = jnp.pad(w, ((0, self._INp - IN), (0, self._OUTp - OUT)))
        self._w_pad = w.astype(compute_dtype)
        b = self._b_row
        if self._OUTp != OUT:
            b = jnp.pad(b, ((0, 0), (0, self._OUTp - OUT)))
        self._b_pad = b  # f32

    def __call__(self, x):
        """x: (B, IN, 1) -> (B, OUT, 1)."""
        B = x.shape[0]
        x2 = x.reshape(B, self.IN)

        # tiny problems: single-block kernel, exact f32, no grid/pipeline cost
        footprint = 4 * (
            _round_up(B, 8) * _round_up(self.IN, 128)
            + _round_up(self.IN, 128) * _round_up(self.OUT, 128)
            + _round_up(B, 8) * _round_up(self.OUT, 128)
        )
        if footprint <= self._SMALL_BYTES:
            out2 = _linear_small(x2.astype(jnp.float32), self._w_f32, self._b_row)
            return out2[:, :, None]

        # tiled path: batch tile chosen per call to minimize padded rows
        tm = _pick_tile(B, self._sublane, 512)
        Bp = _round_up(B, tm)
        tn = _maybe_split_tn(self._tn, self._OUTp, Bp // tm)

        xp = x2
        if (Bp, self._INp) != (B, self.IN):
            xp = jnp.pad(x2, ((0, Bp - B), (0, self._INp - self.IN)))
        xp = xp.astype(self.compute_dtype)

        out2 = _linear_tiled(
            xp, self._w_pad, self._b_pad,
            tm=tm, tn=tn, tk=self._tk, vmem_limit=self._vmem_limit,
        )
        return out2[:B, : self.OUT, None]


def init_linear_params(key, input_features, output_features, gain=1.0,
                       dtype=jnp.float32):
    """Mirrors Linear._initialize_parameters:
       std = gain * sqrt(2/(in+out)); W ~ N(0, std); bias = 0."""
    std = gain * jnp.sqrt(2.0 / float(input_features + output_features))
    weights = std * jax.random.normal(
        key, (input_features, output_features), dtype=dtype)
    bias = jnp.zeros((output_features, 1), dtype=dtype)
    return weights, bias


# ----------------------------------------------------------------------------
# demo / correctness checks
# ----------------------------------------------------------------------------
if __name__ == "__main__":
    key = jax.random.PRNGKey(0)
    k_w1, k_x1, k_w2, k_x2 = jax.random.split(key, 4)

    # --- tiny layer (matches the module's typical use): single-block path ---
    B, IN, OUT = 2, 32, 16
    weights, bias = init_linear_params(k_w1, IN, OUT, gain=1.0)
    x = jax.random.normal(k_x1, (B, IN, 1), dtype=jnp.float32)

    layer = PallasLinear(weights, bias)
    out = jax.block_until_ready(layer(x))

    ref = jnp.einsum("io,bij->boj", weights, x) + bias[None, :, :]
    assert out.shape == (B, OUT, 1), out.shape
    assert jnp.allclose(out, ref, atol=1e-5, rtol=1e-5)

    # --- larger layer: exercises the tiled bf16 path (padding + k reduction) ---
    B2, IN2, OUT2 = 160, 1500, 640
    weights2, bias2 = init_linear_params(k_w2, IN2, OUT2, gain=1.0)
    x2 = jax.random.normal(k_x2, (B2, IN2, 1), dtype=jnp.float32)

    layer2 = PallasLinear(weights2, bias2)
    out2 = jax.block_until_ready(layer2(x2))

    xb = x2[:, :, 0].astype(jnp.bfloat16).astype(jnp.float32)
    wb = weights2.astype(jnp.bfloat16).astype(jnp.float32)
    ref2 = (xb @ wb + bias2.reshape(1, OUT2))[:, :, None]
    assert out2.shape == (B2, OUT2, 1), out2.shape
    assert jnp.allclose(out2, ref2, atol=1e-3, rtol=1e-3)

    print("KERNEL_OK")
</pallas_src>

<mosaic_0001>
module attributes {stable_mosaic.version = 11 : i64} {
  func.func @_linear_small_kernel(%arg0: memref<2x32xf32, #tpu.memory_space<vmem>>, %arg1: memref<32x16xf32, #tpu.memory_space<vmem>>, %arg2: memref<1x16xf32, #tpu.memory_space<vmem>>, %arg3: memref<2x16xf32, #tpu.memory_space<vmem>>) attributes {dimension_semantics = [], scalar_prefetch = 0 : i64, scratch_operands = 0 : i64, tpu.core_type = #tpu.core_type<tc>} {
    %c0 = arith.constant 0 : index
    %c0_0 = arith.constant 0 : index
    %0 = vector.load %arg0[%c0, %c0_0] : memref<2x32xf32, #tpu.memory_space<vmem>>, vector<2x32xf32>
    %c0_1 = arith.constant 0 : index
    %c0_2 = arith.constant 0 : index
    %1 = vector.load %arg1[%c0_1, %c0_2] : memref<32x16xf32, #tpu.memory_space<vmem>>, vector<32x16xf32>
    %cst = arith.constant dense<0.000000e+00> : vector<2x16xf32>
    %2 = tpu.matmul %0, %1, %cst {dimension_numbers = #tpu.dot_dimension_numbers<[1], [0], [0], [1], [0, 0, 1, 1], [], []>} : vector<2x32xf32>, vector<32x16xf32>, vector<2x16xf32> -> vector<2x16xf32>
    %c0_3 = arith.constant 0 : index
    %c0_4 = arith.constant 0 : index
    %3 = vector.load %arg2[%c0_3, %c0_4] : memref<1x16xf32, #tpu.memory_space<vmem>>, vector<1x16xf32>
    %4 = vector.broadcast %3 : vector<1x16xf32> to vector<2x16xf32>
    %5 = arith.addf %2, %4 : vector<2x16xf32>
    %c0_5 = arith.constant 0 : index
    %c0_6 = arith.constant 0 : index
    %6 = vector.load %arg3[%c0_5, %c0_6] : memref<2x16xf32, #tpu.memory_space<vmem>>, vector<2x16xf32>
    tpu.vector_store %arg3[%c0_5, %c0_6], %5 {strides = array<i32>} : memref<2x16xf32, #tpu.memory_space<vmem>>, vector<2x16xf32>,
    return
  }
}

</mosaic_0001>

<llo_original>
// kernel: _linear_small.1
$region0: #{_linear_small.1}
  #allocation0 [shape = 'u32[]', space=smem, size = 0x4, offset = 0x4, fixed_abs, tag = 'smem constant byte address 0x4 - core index']
  #allocation1 [shape = 'u32[144,128]{1,0:T(1,128)}', space=vmem, size = 0x12000, scoped, tag = 'internal scratch']
  %s0 = inlined_call_operand.vmem [shape: f32[2,32], index: 0, kind: input, shape index: {}]
  %s1 = inlined_call_operand.vmem [shape: f32[32,16], index: 1, kind: input, shape index: {}]
  %s2 = inlined_call_operand.vmem [shape: f32[1,16], index: 2, kind: input, shape index: {}]
  %s3 = inlined_call_operand.hbm [shape: f32[2,16], index: 3, kind: output, shape index: {}]
  %s4 = sld [smem:[#allocation0]]
  $region22: #{_linear_small.1} parent=0
    _
  %s6 = ssub.s32 1, %s4
  %s7 = scalar_select 0, %s6, %s4
  $region1: #{_linear_small.1} parent=0
    #allocation2 [shape = 'u8[1024]{0}', space=vmem, size = 0x400, scoped, tag = 'output window, operand 0, single buffered']
    #allocation3 [shape = 's32[1]{0}', space=sflag, size = 0x4, scoped, tag = 'scoped memory for _linear_small.1']
    %8 = vsyncpa [#allocation3], 0
    // Predicated region
    $region2: #{_linear_small.1} parent=1 // pred_check
      _
    $region3: #{_linear_small.1} parent=1 // pred_check_branch
      %10 = sbr.rel (0) target = $region5
    $region4: #{_linear_small.1} parent=1 // pred_region
      _
    $region5: #{_linear_small.1} parent=1 // pred_fallthru
      _
    // Predicated region
    $region6: #{_linear_small.1} parent=1 // pred_check
      _
    $region7: #{_linear_small.1} parent=1 // pred_check_branch
      %12 = sbr.rel (0) target = $region9
    $region8: #{_linear_small.1} parent=1 // pred_region
      _
    $region9: #{_linear_small.1} parent=1 // pred_fallthru
      _
    // Predicated region
    $region10: #{_linear_small.1} parent=1 // pred_check
      _
    $region11: #{_linear_small.1} parent=1 // pred_check_branch
      %14 = sbr.rel (0) target = $region13
    $region12: #{_linear_small.1} parent=1 // pred_region
      _
    $region13: #{_linear_small.1} parent=1 // pred_fallthru
      _
    %v15 = vld [vmem:[%s0] sm:$0x3]
    %v16 = vld [vmem:[%s1] sm:$0xff]
    %v17 = vld [vmem:[%s1 + $0x8] sm:$0xff]
    %v18 = vld [vmem:[%s1 + $0x10] sm:$0xff]
    %v19 = vld [vmem:[%s1 + $0x18] sm:$0xff]
    %v20 = vld [vmem:[%s2] sm:$0x1]
    %v22 = vlaneseq
    %v23 = vshrl.u32 %v22, 7
    %v24 = vsub.s32 0, %v23
    %v25 = vrot.slane %v20, %v24
    %vm27 = vcmask 261120
    %v29 = vsel %vm27, %v15, 0
    %31 = vmatprep.subr.mxu0 0.0
    %32 = vmatpush1.msra.mxu0 %v16
    %33 = vmatprep.subr.mxu0 0.0
    %34 = vmatpush1.msra.mxu0 %v17
    %35 = vmatprep.subr.mxu0 0.0
    %36 = vmatpush1.msra.mxu0 %v18
    %37 = vmatprep.subr.mxu0 0.0
    %38 = vmatpush1.msra.mxu0 %v19
    %39 = vmatprep.subr.mxu0 0.0
    %40 = vmatpush1.msra.mxu0 0.0
    %41 = vmatprep.subr.mxu0 0.0
    %42 = vmatpush1.msra.mxu0 0.0
    %43 = vmatprep.subr.mxu0 0.0
    %44 = vmatpush1.msra.mxu0 0.0
    %45 = vmatprep.subr.mxu0 0.0
    %46 = vmatpush1.msra.mxu0 0.0
    %47 = vmatprep.subr.mxu0 0.0
    %48 = vmatpush1.msra.mxu0 0.0
    %49 = vmatprep.subr.mxu0 0.0
    %50 = vmatpush1.msra.mxu0 0.0
    %51 = vmatprep.subr.mxu0 0.0
    %52 = vmatpush1.msra.mxu0 0.0
    %53 = vmatprep.subr.mxu0 0.0
    %54 = vmatpush1.msra.mxu0 0.0
    %55 = vmatprep.subr.mxu0 0.0
    %56 = vmatpush1.msra.mxu0 0.0
    %57 = vmatprep.subr.mxu0 0.0
    %58 = vmatpush1.msra.mxu0 0.0
    %59 = vmatprep.subr.mxu0 0.0
    %60 = vmatpush1.msra.mxu0 0.0
    %61 = vmatprep.subr.mxu0 0.0
    %62 = vmatpush1.msra.mxu0 0.0
    %63 = vmatprep.subr.mxu0 0.0
    %64 = vmatpush1.msra.mxu0 0.0
    %65 = vmatprep.subr.mxu0 0.0
    %66 = vmatpush1.msra.mxu0 0.0
    %67 = vmatprep.subr.mxu0 0.0
    %68 = vmatpush1.msra.mxu0 0.0
    %69 = vmatprep.subr.mxu0 0.0
    %70 = vmatpush1.msra.mxu0 0.0
    %71 = vmatprep.subr.mxu0 0.0
    %72 = vmatpush1.msra.mxu0 0.0
    %73 = vmatprep.subr.mxu0 0.0
    %74 = vmatpush1.msra.mxu0 0.0
    %75 = vmatprep.subr.mxu0 0.0
    %76 = vmatpush1.msra.mxu0 0.0
    %77 = vmatprep.subr.mxu0 0.0
    %78 = vmatpush1.msra.mxu0 0.0
    %79 = vmatprep.subr.mxu0 0.0
    %80 = vmatpush1.msra.mxu0 0.0
    %81 = vmatprep.subr.mxu0 0.0
    %82 = vmatpush1.msra.mxu0 0.0
    %83 = vmatprep.subr.mxu0 0.0
    %84 = vmatpush1.msra.mxu0 0.0
    %85 = vmatprep.subr.mxu0 0.0
    %86 = vmatpush1.msra.mxu0 0.0
    %87 = vmatprep.subr.mxu0 0.0
    %88 = vmatpush1.msra.mxu0 0.0
    %89 = vmatprep.subr.mxu0 0.0
    %90 = vmatpush1.msra.mxu0 0.0
    %91 = vmatprep.subr.mxu0 0.0
    %92 = vmatpush1.msra.mxu0 0.0
    %93 = vmatprep.subr.mxu0 0.0
    %94 = vmatpush1.msra.mxu0 0.0
    %95 = vmatprep.mubr.f32.mxu0 0.0
    %96 = vmatmul.mubr.f32.gmra.mrb[0].mxu0 %v29
    %v97 = vpop.f32.mrb[0].mxu0
    %v98 = vadd.f32 %v25, %v97
    %v99 = vpop.f32.mrb[0].mxu0
    %100 = vdwg.mxu0
    %vm101 = vcmask 123904
    %102 = vst.msk [vmem:[#allocation2] sm:$0x3] %vm101, %v98
    // Predicated region
    $region14: #{_linear_small.1} parent=1 // pred_check
      _
    $region15: #{_linear_small.1} parent=1 // pred_check_branch
      %104 = sbr.rel (0) target = $region17
    $region16: #{_linear_small.1} parent=1 // pred_region
      %s106 = ssub.s32 32, 32
      %107 = vsyncadd [#allocation3], %s106
      %s109 = sshll.u32 [#allocation2], 4
      %s110 = int_to_ptr.vmem [resolvable:$true] %s109
      %112 = dma.vmem_to_hbm [thread:$0]  %s110, 32, %s3, [#allocation3]
    $region17: #{_linear_small.1} parent=1 // pred_fallthru
      _
    // Predicated region
    $region18: #{_linear_small.1} parent=1 // pred_check
      _
    $region19: #{_linear_small.1} parent=1 // pred_check_branch
      %114 = sbr.rel (0) target = $region21
    $region20: #{_linear_small.1} parent=1 // pred_region
      %115 = dma.done [#allocation3], 32
    $region21: #{_linear_small.1} parent=1 // pred_fallthru
      _
    %116 = vsyncpa [#allocation3], 1

</llo_original>
